<compile_context>
chip_gen: v7x
topology: tpu7x:2x2x1
jax: 0.10.0
libtpu: 0.0.40
codegen_flags: <defaults>
</compile_context>

<pallas_src>
import math

import jax
import jax.numpy as jnp
from jax.experimental import pallas as pl
from jax.experimental.pallas import tpu as pltpu

IN_FEATURES = 773
HIDDEN = (200, 100, 50)        # logical hidden widths
PAD = (256, 128, 128)          # lane-aligned padded hidden widths
OUT_FEATURES = 1


def _round_up(x, m):
    return ((x + m - 1) // m) * m


# ----------------------------------------------------------------------------
# Kernel
# ----------------------------------------------------------------------------
def split_siamese_kernel(x_ref, w1_ref, b1_ref, w2_ref, b2_ref,
                         w3_ref, b3_ref, w4_ref, b4_ref, out_ref):
    tb = out_ref.shape[0]                       # batch-tile rows (static)

    # Branch fusion: collapse the (2, tb, 773) bf16 block into one (2*tb, 773)
    # batch with a layout-preserving reshape (tb % 16 == 0 -> bf16 (16, 128)
    # tiles line up; no VMEM copy, unlike the previous concatenate).
    xs = x_ref[...].reshape(2 * tb, IN_FEATURES)

    # Layer 1: 773 -> 256 (pad of 200). Inputs already bf16 from the wrapper.
    h = jnp.dot(xs, w1_ref[...], preferred_element_type=jnp.float32) + b1_ref[...]
    h = jnp.maximum(h, 0.0)

    # Layer 2: 256 -> 128 (pad of 100).
    h = jnp.dot(h.astype(jnp.bfloat16), w2_ref[...],
                preferred_element_type=jnp.float32) + b2_ref[...]
    h = jnp.maximum(h, 0.0)

    # Layer 3: 128 -> 128 (pad of 50).
    h = jnp.dot(h.astype(jnp.bfloat16), w3_ref[...],
                preferred_element_type=jnp.float32) + b3_ref[...]
    h = jnp.maximum(h, 0.0)

    # Final 50 -> 1 layer as VPU multiply + lane reduction (avoids the
    # degenerate N=1 MXU matmul); w4 is a zero-padded (1, 128) lane vector.
    s = jnp.sum(h * w4_ref[...], axis=-1, keepdims=True) + b4_ref[...]  # (2*tb, 1)

    sa = s[:tb]                                 # branch A scores (tb, 1)
    sb = s[tb:]                                 # branch B scores (tb, 1)

    # Numerically stable pair softmax; divide via EUP approx reciprocal.
    m = jnp.maximum(sa, sb)
    ea = jnp.exp(sa - m)
    eb = jnp.exp(sb - m)
    inv = pl.reciprocal(ea + eb, approx=True)
    pa = ea * inv
    pb = eb * inv

    # Assemble (tb, 2) without a lane-concatenate: select by column index.
    col = jax.lax.broadcasted_iota(jnp.int32, out_ref.shape, 1)
    out_ref[...] = jnp.where(col == 0, pa, pb)


# ----------------------------------------------------------------------------
# Parameters
# ----------------------------------------------------------------------------
def init_params(key):
    """torch.nn.Linear default init: U(-1/sqrt(fan_in), 1/sqrt(fan_in)).
    Weights stored as (in, out) so the kernel computes x @ W + b."""
    dims = [IN_FEATURES] + list(HIDDEN) + [OUT_FEATURES]
    raw = []
    for fan_in, fan_out in zip(dims[:-1], dims[1:]):
        key, kw, kb = jax.random.split(key, 3)
        bound = 1.0 / math.sqrt(fan_in)
        w = jax.random.uniform(kw, (fan_in, fan_out), jnp.float32,
                               minval=-bound, maxval=bound)
        b = jax.random.uniform(kb, (1, fan_out), jnp.float32,
                               minval=-bound, maxval=bound)
        raw.append((w, b))
    return raw


def pack_params(raw):
    """Zero-pad hidden widths to lane multiples, cast matmul weights to bf16,
    and turn the (50, 1) final layer into a (1, 128) f32 lane vector."""
    (w1, b1), (w2, b2), (w3, b3), (w4, b4) = raw
    in_pad = [IN_FEATURES, PAD[0], PAD[1]]
    out_pad = [PAD[0], PAD[1], PAD[2]]
    packed = []
    for (w, b), ip, op in zip([(w1, b1), (w2, b2), (w3, b3)], in_pad, out_pad):
        wp = jnp.zeros((ip, op), jnp.float32).at[:w.shape[0], :w.shape[1]].set(w)
        bp = jnp.zeros((1, op), jnp.float32).at[:, :b.shape[1]].set(b)
        packed.extend([wp.astype(jnp.bfloat16), bp])
    w4v = jnp.zeros((1, PAD[2]), jnp.float32).at[0, :w4.shape[0]].set(w4[:, 0])
    packed.extend([w4v, b4])                    # b4 stays (1, 1) f32
    return tuple(packed)


# ----------------------------------------------------------------------------
# Wrapper
# ----------------------------------------------------------------------------
def _vmem_budget_bytes(tb):
    """Per-grid-step VMEM footprint (lane/sublane padded) x2 safety margin,
    clamped to stay legal on every generation (v7x: 64 MiB physical / TC)."""
    lanes_in = _round_up(IN_FEATURES, 128)
    x_blk = 2 * tb * lanes_in * 2                       # bf16 x tile
    acts = 2 * tb * (PAD[0] * 6 + PAD[1] * 6 + PAD[2] * 4)
    wts = (_round_up(IN_FEATURES, 16) * PAD[0] + PAD[0] * PAD[1]
           + PAD[1] * PAD[2]) * 2 + (PAD[0] + PAD[1] + 2 * PAD[2]) * 4
    out_blk = tb * 128 * 4
    est = 2 * x_blk + x_blk + acts + 2 * wts + 2 * out_blk
    return int(min(max(2 * est, 32 << 20), 44 << 20))


def split_siamese_forward(x, packed):
    """x: (B, 2*773) f32  OR pre-split (2, B, 773) -> (B, 2) softmax probs."""
    F = IN_FEATURES
    w1, b1, w2, b2, w3, b3, w4, b4 = packed

    if x.ndim == 3:
        # Preferred upstream layout (2, B, 773): no extra HBM stacking pass.
        B = x.shape[1]
        xs = x.astype(jnp.bfloat16)
    else:
        B = x.shape[0]
        # Fuse the bf16 cast into the branch-stack so the intermediate slab
        # written + re-read by the kernel is half the f32 size.
        x16 = x.astype(jnp.bfloat16)
        xs = jnp.stack([x16[:, :F], x16[:, F:]], axis=0)     # (2, B, 773) bf16

    # Batch tiling: tb multiple of 16 (free bf16 in-kernel reshape), >=4 grid
    # steps at large B so both v7x TensorCores get work, capped at 1024.
    tb = min(_round_up(max(-(-B // 4), 1), 16), 1024)
    bp = _round_up(_round_up(B, 16), tb)
    if bp != B:
        # Padded rows are zeros -> (0.5, 0.5) outputs, sliced off below.
        xs = jnp.pad(xs, ((0, 0), (0, bp - B), (0, 0)))
    grid = (bp // tb,)

    def wspec(arr):
        # Constant index_map -> weights stay VMEM-resident across grid steps.
        # TODO(synk): pipeline_mode=pl.Buffered(1) would also drop the (small)
        # double-buffer allocation for these resident operands.
        return pl.BlockSpec(arr.shape, lambda i: (0, 0))

    # Advisory cost hint so XLA overlaps the weight DMA with surrounding ops
    # (matters most for small, latency-bound batches).
    flops = 4 * B * (IN_FEATURES * PAD[0] + PAD[0] * PAD[1]
                     + PAD[1] * PAD[2] + PAD[2])
    weight_bytes = (IN_FEATURES * PAD[0] + PAD[0] * PAD[1]
                    + PAD[1] * PAD[2]) * 2 + (PAD[0] + PAD[1] + 2 * PAD[2]) * 4
    cost = pl.CostEstimate(
        flops=int(flops),
        transcendentals=int(2 * B),
        bytes_accessed=int(2 * B * IN_FEATURES * 2 + weight_bytes + B * 2 * 4))

    out = pl.pallas_call(
        split_siamese_kernel,
        out_shape=jax.ShapeDtypeStruct((bp, 2), jnp.float32),
        grid_spec=pltpu.PrefetchScalarGridSpec(
            num_scalar_prefetch=0,
            grid=grid,
            in_specs=[
                pl.BlockSpec((2, tb, F), lambda i: (0, i, 0)),
                wspec(w1), wspec(b1),
                wspec(w2), wspec(b2),
                wspec(w3), wspec(b3),
                wspec(w4), wspec(b4),
            ],
            out_specs=pl.BlockSpec((tb, 2), lambda i: (i, 0)),
        ),
        compiler_params=pltpu.CompilerParams(
            dimension_semantics=("parallel",),
            vmem_limit_bytes=_vmem_budget_bytes(tb)),
        cost_estimate=cost,
    )(xs, w1, b1, w2, b2, w3, b3, w4, b4)
    return out[:B]


# ----------------------------------------------------------------------------
# Pure-JAX reference (same padded bf16 weights / same math)
# ----------------------------------------------------------------------------
def reference_forward(x, packed):
    w1, b1, w2, b2, w3, b3, w4v, b4 = packed

    def mlp(h):
        h = jnp.dot(h.astype(jnp.bfloat16), w1,
                    preferred_element_type=jnp.float32) + b1
        h = jnp.maximum(h, 0.0)
        h = jnp.dot(h.astype(jnp.bfloat16), w2,
                    preferred_element_type=jnp.float32) + b2
        h = jnp.maximum(h, 0.0)
        h = jnp.dot(h.astype(jnp.bfloat16), w3,
                    preferred_element_type=jnp.float32) + b3
        h = jnp.maximum(h, 0.0)
        return jnp.sum(h * w4v, axis=-1, keepdims=True) + b4

    F = IN_FEATURES
    logits = jnp.concatenate([mlp(x[:, :F]), mlp(x[:, F:])], axis=-1)
    return jax.nn.softmax(logits, axis=-1)


if __name__ == "__main__":
    key = jax.random.PRNGKey(0)
    key, kp, kx = jax.random.split(key, 3)

    raw = init_params(kp)
    packed = pack_params(raw)

    B = 8
    x = jax.random.normal(kx, (B, 2 * IN_FEATURES), dtype=jnp.float32)

    out = split_siamese_forward(x, packed)
    out = jax.block_until_ready(out)

    ref = reference_forward(x, packed)
    assert out.shape == (B, 2)
    # approx reciprocal + bf16 matmul path -> slightly loosened tolerances
    assert jnp.allclose(jnp.sum(out, axis=-1), 1.0, atol=5e-3)
    assert jnp.allclose(out, ref, atol=5e-3, rtol=0)

    print("KERNEL_OK")
</pallas_src>

<mosaic_0001>
module attributes {stable_mosaic.version = 11 : i64} {
  func.func @split_siamese_kernel(%arg0: i32, %arg1: memref<2x16x773xbf16, #tpu.memory_space<vmem>>, %arg2: memref<773x256xbf16, #tpu.memory_space<vmem>>, %arg3: memref<1x256xf32, #tpu.memory_space<vmem>>, %arg4: memref<256x128xbf16, #tpu.memory_space<vmem>>, %arg5: memref<1x128xf32, #tpu.memory_space<vmem>>, %arg6: memref<128x128xbf16, #tpu.memory_space<vmem>>, %arg7: memref<1x128xf32, #tpu.memory_space<vmem>>, %arg8: memref<1x128xf32, #tpu.memory_space<vmem>>, %arg9: memref<1x1xf32, #tpu.memory_space<vmem>>, %arg10: memref<16x2xf32, #tpu.memory_space<vmem>>) attributes {dimension_semantics = [#tpu.dimension_semantics<parallel>], iteration_bounds = array<i64: 1>, scalar_prefetch = 0 : i64, scratch_operands = 0 : i64, tpu.core_type = #tpu.core_type<tc>, window_params = [{transform_indices = @transform_0, window_bounds = array<i64: 2, 16, 773>}, {pipeline_mode = #tpu.pipeline_mode<synchronous>, transform_indices = @transform_1, window_bounds = array<i64: 773, 256>}, {pipeline_mode = #tpu.pipeline_mode<synchronous>, transform_indices = @transform_2, window_bounds = array<i64: 1, 256>}, {pipeline_mode = #tpu.pipeline_mode<synchronous>, transform_indices = @transform_3, window_bounds = array<i64: 256, 128>}, {pipeline_mode = #tpu.pipeline_mode<synchronous>, transform_indices = @transform_4, window_bounds = array<i64: 1, 128>}, {pipeline_mode = #tpu.pipeline_mode<synchronous>, transform_indices = @transform_5, window_bounds = array<i64: 128, 128>}, {pipeline_mode = #tpu.pipeline_mode<synchronous>, transform_indices = @transform_6, window_bounds = array<i64: 1, 128>}, {pipeline_mode = #tpu.pipeline_mode<synchronous>, transform_indices = @transform_7, window_bounds = array<i64: 1, 128>}, {pipeline_mode = #tpu.pipeline_mode<synchronous>, transform_indices = @transform_8, window_bounds = array<i64: 1, 1>}, {transform_indices = @transform_9, window_bounds = array<i64: 16, 2>}]} {
    %c0 = arith.constant 0 : index
    %c0_0 = arith.constant 0 : index
    %c0_1 = arith.constant 0 : index
    %0 = vector.load %arg1[%c0, %c0_0, %c0_1] : memref<2x16x773xbf16, #tpu.memory_space<vmem>>, vector<2x16x773xbf16>
    %1 = vector.shape_cast %0 : vector<2x16x773xbf16> to vector<32x773xbf16>
    %c0_2 = arith.constant 0 : index
    %c0_3 = arith.constant 0 : index
    %2 = vector.load %arg2[%c0_2, %c0_3] : memref<773x256xbf16, #tpu.memory_space<vmem>>, vector<773x256xbf16>
    %cst = arith.constant dense<0.000000e+00> : vector<32x256xf32>
    %3 = tpu.matmul %1, %2, %cst {dimension_numbers = #tpu.dot_dimension_numbers<[1], [0], [0], [1], [0, 0, 1, 1], [], []>} : vector<32x773xbf16>, vector<773x256xbf16>, vector<32x256xf32> -> vector<32x256xf32>
    %c0_4 = arith.constant 0 : index
    %c0_5 = arith.constant 0 : index
    %4 = vector.load %arg3[%c0_4, %c0_5] : memref<1x256xf32, #tpu.memory_space<vmem>>, vector<1x256xf32>
    %5 = vector.broadcast %4 : vector<1x256xf32> to vector<32x256xf32>
    %6 = arith.addf %3, %5 : vector<32x256xf32>
    %cst_6 = arith.constant 0.000000e+00 : f32
    %7 = vector.broadcast %cst_6 : f32 to vector<32x256xf32>
    %8 = arith.maximumf %6, %7 : vector<32x256xf32>
    %9 = arith.truncf %8 : vector<32x256xf32> to vector<32x256xbf16>
    %c0_7 = arith.constant 0 : index
    %c0_8 = arith.constant 0 : index
    %10 = vector.load %arg4[%c0_7, %c0_8] : memref<256x128xbf16, #tpu.memory_space<vmem>>, vector<256x128xbf16>
    %cst_9 = arith.constant dense<0.000000e+00> : vector<32x128xf32>
    %11 = tpu.matmul %9, %10, %cst_9 {dimension_numbers = #tpu.dot_dimension_numbers<[1], [0], [0], [1], [0, 0, 1, 1], [], []>} : vector<32x256xbf16>, vector<256x128xbf16>, vector<32x128xf32> -> vector<32x128xf32>
    %c0_10 = arith.constant 0 : index
    %c0_11 = arith.constant 0 : index
    %12 = vector.load %arg5[%c0_10, %c0_11] : memref<1x128xf32, #tpu.memory_space<vmem>>, vector<1x128xf32>
    %13 = vector.broadcast %12 : vector<1x128xf32> to vector<32x128xf32>
    %14 = arith.addf %11, %13 : vector<32x128xf32>
    %cst_12 = arith.constant 0.000000e+00 : f32
    %15 = vector.broadcast %cst_12 : f32 to vector<32x128xf32>
    %16 = arith.maximumf %14, %15 : vector<32x128xf32>
    %17 = arith.truncf %16 : vector<32x128xf32> to vector<32x128xbf16>
    %c0_13 = arith.constant 0 : index
    %c0_14 = arith.constant 0 : index
    %18 = vector.load %arg6[%c0_13, %c0_14] : memref<128x128xbf16, #tpu.memory_space<vmem>>, vector<128x128xbf16>
    %cst_15 = arith.constant dense<0.000000e+00> : vector<32x128xf32>
    %19 = tpu.matmul %17, %18, %cst_15 {dimension_numbers = #tpu.dot_dimension_numbers<[1], [0], [0], [1], [0, 0, 1, 1], [], []>} : vector<32x128xbf16>, vector<128x128xbf16>, vector<32x128xf32> -> vector<32x128xf32>
    %c0_16 = arith.constant 0 : index
    %c0_17 = arith.constant 0 : index
    %20 = vector.load %arg7[%c0_16, %c0_17] : memref<1x128xf32, #tpu.memory_space<vmem>>, vector<1x128xf32>
    %21 = vector.broadcast %20 : vector<1x128xf32> to vector<32x128xf32>
    %22 = arith.addf %19, %21 : vector<32x128xf32>
    %cst_18 = arith.constant 0.000000e+00 : f32
    %23 = vector.broadcast %cst_18 : f32 to vector<32x128xf32>
    %24 = arith.maximumf %22, %23 : vector<32x128xf32>
    %c0_19 = arith.constant 0 : index
    %c0_20 = arith.constant 0 : index
    %25 = vector.load %arg8[%c0_19, %c0_20] : memref<1x128xf32, #tpu.memory_space<vmem>>, vector<1x128xf32>
    %26 = vector.broadcast %25 : vector<1x128xf32> to vector<32x128xf32>
    %27 = arith.mulf %24, %26 : vector<32x128xf32>
    %cst_21 = arith.constant dense<0.000000e+00> : vector<32xf32>
    %28 = vector.multi_reduction <add>, %27, %cst_21 [1] : vector<32x128xf32> to vector<32xf32>
    %29 = vector.shape_cast %28 : vector<32xf32> to vector<32x1xf32>
    %c0_22 = arith.constant 0 : index
    %c0_23 = arith.constant 0 : index
    %30 = vector.load %arg9[%c0_22, %c0_23] : memref<1x1xf32, #tpu.memory_space<vmem>>, vector<1x1xf32>
    %31 = vector.broadcast %30 : vector<1x1xf32> to vector<32x1xf32>
    %32 = arith.addf %29, %31 : vector<32x1xf32>
    %33 = vector.extract_strided_slice %32 {offsets = [0, 0], sizes = [16, 1], strides = [1, 1]} : vector<32x1xf32> to vector<16x1xf32>
    %34 = vector.extract_strided_slice %32 {offsets = [16, 0], sizes = [16, 1], strides = [1, 1]} : vector<32x1xf32> to vector<16x1xf32>
    %35 = arith.maximumf %33, %34 : vector<16x1xf32>
    %36 = arith.subf %33, %35 : vector<16x1xf32>
    %37 = math.exp %36 : vector<16x1xf32>
    %38 = arith.subf %34, %35 : vector<16x1xf32>
    %39 = math.exp %38 : vector<16x1xf32>
    %40 = arith.addf %37, %39 : vector<16x1xf32>
    %41 = tpu.reciprocal %40 {approx = true} : vector<16x1xf32> -> vector<16x1xf32>
    %42 = arith.mulf %37, %41 : vector<16x1xf32>
    %43 = arith.mulf %39, %41 : vector<16x1xf32>
    %44 = tpu.iota {dimensions = array<i32: 1>} : vector<16x2xi32>
    %c0_i32 = arith.constant 0 : i32
    %45 = vector.broadcast %c0_i32 : i32 to vector<16x2xi32>
    %46 = arith.cmpi eq, %44, %45 : vector<16x2xi32>
    %47 = vector.shape_cast %42 : vector<16x1xf32> to vector<16x1xf32>
    %48 = vector.broadcast %47 : vector<16x1xf32> to vector<16x2xf32>
    %49 = vector.shape_cast %43 : vector<16x1xf32> to vector<16x1xf32>
    %50 = vector.broadcast %49 : vector<16x1xf32> to vector<16x2xf32>
    %51 = arith.select %46, %48, %50 : vector<16x2xi1>, vector<16x2xf32>
    %c0_24 = arith.constant 0 : index
    %c0_25 = arith.constant 0 : index
    %52 = vector.load %arg10[%c0_24, %c0_25] : memref<16x2xf32, #tpu.memory_space<vmem>>, vector<16x2xf32>
    tpu.vector_store %arg10[%c0_24, %c0_25], %51 {strides = array<i32>} : memref<16x2xf32, #tpu.memory_space<vmem>>, vector<16x2xf32>,
    return
  }
  func.func @transform_0(%arg0: i32) -> (i32, i32, i32) {
    %c0_i32 = arith.constant 0 : i32
    %c0_i32_0 = arith.constant 0 : i32
    %c0_i32_1 = arith.constant 0 : i32
    return %c0_i32, %arg0, %c0_i32_0 : i32, i32, i32
  }
  func.func @transform_1(%arg0: i32) -> (i32, i32) {
    %c0_i32 = arith.constant 0 : i32
    %c0_i32_0 = arith.constant 0 : i32
    %c0_i32_1 = arith.constant 0 : i32
    return %c0_i32, %c0_i32_0 : i32, i32
  }
  func.func @transform_2(%arg0: i32) -> (i32, i32) {
    %c0_i32 = arith.constant 0 : i32
    %c0_i32_0 = arith.constant 0 : i32
    %c0_i32_1 = arith.constant 0 : i32
    return %c0_i32, %c0_i32_0 : i32, i32
  }
  func.func @transform_3(%arg0: i32) -> (i32, i32) {
    %c0_i32 = arith.constant 0 : i32
    %c0_i32_0 = arith.constant 0 : i32
    %c0_i32_1 = arith.constant 0 : i32
    return %c0_i32, %c0_i32_0 : i32, i32
  }
  func.func @transform_4(%arg0: i32) -> (i32, i32) {
    %c0_i32 = arith.constant 0 : i32
    %c0_i32_0 = arith.constant 0 : i32
    %c0_i32_1 = arith.constant 0 : i32
    return %c0_i32, %c0_i32_0 : i32, i32
  }
  func.func @transform_5(%arg0: i32) -> (i32, i32) {
    %c0_i32 = arith.constant 0 : i32
    %c0_i32_0 = arith.constant 0 : i32
    %c0_i32_1 = arith.constant 0 : i32
    return %c0_i32, %c0_i32_0 : i32, i32
  }
  func.func @transform_6(%arg0: i32) -> (i32, i32) {
    %c0_i32 = arith.constant 0 : i32
    %c0_i32_0 = arith.constant 0 : i32
    %c0_i32_1 = arith.constant 0 : i32
    return %c0_i32, %c0_i32_0 : i32, i32
  }
  func.func @transform_7(%arg0: i32) -> (i32, i32) {
    %c0_i32 = arith.constant 0 : i32
    %c0_i32_0 = arith.constant 0 : i32
    %c0_i32_1 = arith.constant 0 : i32
    return %c0_i32, %c0_i32_0 : i32, i32
  }
  func.func @transform_8(%arg0: i32) -> (i32, i32) {
    %c0_i32 = arith.constant 0 : i32
    %c0_i32_0 = arith.constant 0 : i32
    %c0_i32_1 = arith.constant 0 : i32
    return %c0_i32, %c0_i32_0 : i32, i32
  }
  func.func @transform_9(%arg0: i32) -> (i32, i32) {
    %c0_i32 = arith.constant 0 : i32
    %c0_i32_0 = arith.constant 0 : i32
    return %arg0, %c0_i32 : i32, i32
  }
}

</mosaic_0001>

<llo_original>
// kernel: tpu_custom_call.1
$region0: #{tpu_custom_call.1}
  #allocation0 [shape = 'u32[]', space=smem, size = 0x4, offset = 0x4, fixed_abs, tag = 'smem constant byte address 0x4 - core index']
  #allocation1 [shape = 'u32[144,128]{1,0:T(1,128)}', space=vmem, size = 0x12000, scoped, tag = 'internal scratch']
  #allocation2 [shape = 'f32[1,1]{1,0:T(1,128)S(1)}', space=vmem, size = 0x200, scoped, tag = 'scoped memory for tpu_custom_call.1']
  %s0 = inlined_call_operand.hbm [shape: bf16[2,16,773], index: 0, kind: input, shape index: {}]
  %s1 = inlined_call_operand.hbm [shape: bf16[773,256], index: 1, kind: input, shape index: {}]
  %s2 = inlined_call_operand.vmem [shape: f32[1,256], index: 2, kind: input, shape index: {}]
  %s3 = inlined_call_operand.hbm [shape: bf16[256,128], index: 3, kind: input, shape index: {}]
  %s4 = inlined_call_operand.vmem [shape: f32[1,128], index: 4, kind: input, shape index: {}]
  %s5 = inlined_call_operand.hbm [shape: bf16[128,128], index: 5, kind: input, shape index: {}]
  %s6 = inlined_call_operand.vmem [shape: f32[1,128], index: 6, kind: input, shape index: {}]
  %s7 = inlined_call_operand.vmem [shape: f32[1,128], index: 7, kind: input, shape index: {}]
  %s8 = inlined_call_operand.<no memory space> [shape: f32[1,1], index: 8, kind: input, shape index: {}]
  %s9 = inlined_call_operand.vmem [shape: f32[16,2], index: 9, kind: output, shape index: {}]
  %s10 = sld [smem:[#allocation0]]
  $region62: #{tpu_custom_call.1} parent=0
    _
  %s12 = ssub.s32 1, %s10
  %s13 = scalar_select 0, %s12, %s10
  %v14 = vstv %s8
  %15 = vst [vmem:[#allocation2] sm:$0x1] %v14
  $region1: #{tpu_custom_call.1} parent=0
    #allocation3 [shape = 'u8[57344]{0}', space=vmem, size = 0xe000, scoped, tag = 'input window, operand 0, single buffered']
    #allocation4 [shape = 's32[1]{0}', space=sflag, size = 0x4, scoped, tag = 'scoped memory for tpu_custom_call.1']
    #allocation5 [shape = 'u8[397312]{0}', space=vmem, size = 0x61000, scoped, tag = 'input window, operand 1, single buffered']
    #allocation6 [shape = 's32[1]{0}', space=sflag, size = 0x4, scoped, tag = 'scoped memory for tpu_custom_call.1']
    #allocation7 [shape = 'u8[65536]{0}', space=vmem, size = 0x10000, scoped, tag = 'input window, operand 3, single buffered']
    #allocation8 [shape = 'u8[32768]{0}', space=vmem, size = 0x8000, scoped, tag = 'input window, operand 5, single buffered']
    #allocation9 [shape = 's32[1]{0}', space=sflag, size = 0x4, scoped, tag = 'scoped memory for tpu_custom_call.1']
    %16 = vsyncpa [#allocation4], 0
    %17 = vsyncpa [#allocation6], 0
    %18 = vsyncpa [#allocation9], 0
    // Predicated region
    $region2: #{tpu_custom_call.1} parent=1 // pred_check
      _
    $region3: #{tpu_custom_call.1} parent=1 // pred_check_branch
      %20 = sbr.rel (0) target = $region5
    $region4: #{tpu_custom_call.1} parent=1 // pred_region
      %s22 = ssub.s32 1792, 1792
      %23 = vsyncadd [#allocation4], %s22
      %s24 = sshll.u32 [#allocation3], 4
      %s25 = int_to_ptr.vmem [resolvable:$true] %s24
      %30 = dma.hbm_to_vmem [thread:$0]  %s0, 1792, %s25, [#allocation4], 448, 448, 28
    $region5: #{tpu_custom_call.1} parent=1 // pred_fallthru
      _
    // Predicated region
    $region6: #{tpu_custom_call.1} parent=1 // pred_check
      _
    $region7: #{tpu_custom_call.1} parent=1 // pred_check_branch
      %32 = sbr.rel (0) target = $region9
    $region8: #{tpu_custom_call.1} parent=1 // pred_region
      %s34 = ssub.s32 12416, 12416
      %35 = vsyncadd [#allocation6], %s34
      %s36 = sshll.u32 [#allocation5], 4
      %s37 = int_to_ptr.vmem [resolvable:$true] %s36
      %42 = dma.hbm_to_vmem [thread:$0]  %s1, 12416, %s37, [#allocation6], 128, 128, 8
    $region9: #{tpu_custom_call.1} parent=1 // pred_fallthru
      _
    // Predicated region
    $region10: #{tpu_custom_call.1} parent=1 // pred_check
      _
    $region11: #{tpu_custom_call.1} parent=1 // pred_check_branch
      %44 = sbr.rel (0) target = $region13
    $region12: #{tpu_custom_call.1} parent=1 // pred_region
      _
    $region13: #{tpu_custom_call.1} parent=1 // pred_fallthru
      _
    // Predicated region
    $region14: #{tpu_custom_call.1} parent=1 // pred_check
      _
    $region15: #{tpu_custom_call.1} parent=1 // pred_check_branch
      %46 = sbr.rel (0) target = $region17
    $region16: #{tpu_custom_call.1} parent=1 // pred_region
      %s48 = ssub.s32 2048, 2048
      %49 = vsyncadd [#allocation6], %s48
      %s50 = sshll.u32 [#allocation7], 4
      %s51 = int_to_ptr.vmem [resolvable:$true] %s50
      %56 = dma.hbm_to_vmem [thread:$0]  %s3, 2048, %s51, [#allocation6], 64, 64, 4
    $region17: #{tpu_custom_call.1} parent=1 // pred_fallthru
      _
    // Predicated region
    $region18: #{tpu_custom_call.1} parent=1 // pred_check
      _
    $region19: #{tpu_custom_call.1} parent=1 // pred_check_branch
      %58 = sbr.rel (0) target = $region21
    $region20: #{tpu_custom_call.1} parent=1 // pred_region
      _
    $region21: #{tpu_custom_call.1} parent=1 // pred_fallthru
      _
    // Predicated region
    $region22: #{tpu_custom_call.1} parent=1 // pred_check
      _
    $region23: #{tpu_custom_call.1} parent=1 // pred_check_branch
      %60 = sbr.rel (0) target = $region25
    $region24: #{tpu_custom_call.1} parent=1 // pred_region
      %s62 = ssub.s32 1024, 1024
      %63 = vsyncadd [#allocation9], %s62
      %s64 = sshll.u32 [#allocation8], 4
      %s65 = int_to_ptr.vmem [resolvable:$true] %s64
      %70 = dma.hbm_to_vmem [thread:$0]  %s5, 1024, %s65, [#allocation9], 64, 64, 4
    $region25: #{tpu_custom_call.1} parent=1 // pred_fallthru
      _
    // Predicated region
    $region26: #{tpu_custom_call.1} parent=1 // pred_check
      _
    $region27: #{tpu_custom_call.1} parent=1 // pred_check_branch
      %72 = sbr.rel (0) target = $region29
    $region28: #{tpu_custom_call.1} parent=1 // pred_region
      _
    $region29: #{tpu_custom_call.1} parent=1 // pred_fallthru
      _
    // Predicated region
    $region30: #{tpu_custom_call.1} parent=1 // pred_check
      _
    $region31: #{tpu_custom_call.1} parent=1 // pred_check_branch
      %74 = sbr.rel (0) target = $region33
    $region32: #{tpu_custom_call.1} parent=1 // pred_region
      _
    $region33: #{tpu_custom_call.1} parent=1 // pred_fallthru
      _
    // Predicated region
    $region34: #{tpu_custom_call.1} parent=1 // pred_check
      _
    $region35: #{tpu_custom_call.1} parent=1 // pred_check_branch
      %76 = sbr.rel (0) target = $region37
    $region36: #{tpu_custom_call.1} parent=1 // pred_region
      _
    $region37: #{tpu_custom_call.1} parent=1 // pred_fallthru
      _
    // Predicated region
    $region38: #{tpu_custom_call.1} parent=1 // pred_check
      _
    $region39: #{tpu_custom_call.1} parent=1 // pred_check_branch
      %78 = sbr.rel (0) target = $region41
    $region40: #{tpu_custom_call.1} parent=1 // pred_region
      %79 = dma.done [#allocation4], 1792
    $region41: #{tpu_custom_call.1} parent=1 // pred_fallthru
      _
    // Predicated region
    $region42: #{tpu_custom_call.1} parent=1 // pred_check
      _
    $region43: #{tpu_custom_call.1} parent=1 // pred_check_branch
      %81 = sbr.rel (0) target = $region45
    $region44: #{tpu_custom_call.1} parent=1 // pred_region
      %82 = dma.done [#allocation6], 12416
    $region45: #{tpu_custom_call.1} parent=1 // pred_fallthru
      _
    // Predicated region
    $region46: #{tpu_custom_call.1} parent=1 // pred_check
      _
    $region47: #{tpu_custom_call.1} parent=1 // pred_check_branch
      %84 = sbr.rel (0) target = $region49
    $region48: #{tpu_custom_call.1} parent=1 // pred_region
      %85 = dma.done [#allocation6], 2048
    $region49: #{tpu_custom_call.1} parent=1 // pred_fallthru
      _
    // Predicated region
    $region50: #{tpu_custom_call.1} parent=1 // pred_check
      _
    $region51: #{tpu_custom_call.1} parent=1 // pred_check_branch
      %87 = sbr.rel (0) target = $region53
    $region52: #{tpu_custom_call.1} parent=1 // pred_region
      %88 = dma.done [#allocation9], 1024
    $region53: #{tpu_custom_call.1} parent=1 // pred_fallthru
      _
    %v90 = vld [vmem:[#allocation3] sm:$0xff]
    %v91 = vld [vmem:[#allocation3 + $0x8] sm:$0xff]
    %v92 = vld [vmem:[#allocation3 + $0x10] sm:$0xff]
    %v93 = vld [vmem:[#allocation3 + $0x18] sm:$0xf]
    %v94 = vld [vmem:[#allocation3 + $0x1c] sm:$0xff]
    %v95 = vld [vmem:[#allocation3 + $0x24] sm:$0xff]
    %v96 = vld [vmem:[#allocation3 + $0x2c] sm:$0xff]
    %v97 = vld [vmem:[#allocation3 + $0x34] sm:$0xf]
    %v98 = vld [vmem:[#allocation3 + $0x38] sm:$0xff]
    %v99 = vld [vmem:[#allocation3 + $0x40] sm:$0xff]
    %v100 = vld [vmem:[#allocation3 + $0x48] sm:$0xff]
    %v101 = vld [vmem:[#allocation3 + $0x50] sm:$0xf]
    %v102 = vld [vmem:[#allocation3 + $0x54] sm:$0xff]
    %v103 = vld [vmem:[#allocation3 + $0x5c] sm:$0xff]
    %v104 = vld [vmem:[#allocation3 + $0x64] sm:$0xff]
    %v105 = vld [vmem:[#allocation3 + $0x6c] sm:$0xf]
    %v106 = vld [vmem:[#allocation5] sm:$0xff]
    %v107 = vld [vmem:[#allocation5 + $0x8] sm:$0xff]
    %v108 = vld [vmem:[#allocation5 + $0x10] sm:$0xff]
    %v109 = vld [vmem:[#allocation5 + $0x18] sm:$0xff]
    %v110 = vld [vmem:[#allocation5 + $0x20] sm:$0xff]
    %v111 = vld [vmem:[#allocation5 + $0x28] sm:$0xff]
    %v112 = vld [vmem:[#allocation5 + $0x30] sm:$0xff]
    %v113 = vld [vmem:[#allocation5 + $0x38] sm:$0xff]
    %v114 = vld [vmem:[#allocation5 + $0x40] sm:$0xff]
    %v115 = vld [vmem:[#allocation5 + $0x48] sm:$0xff]
    %v116 = vld [vmem:[#allocation5 + $0x50] sm:$0xff]
    %v117 = vld [vmem:[#allocation5 + $0x58] sm:$0xff]
    %v118 = vld [vmem:[#allocation5 + $0x60] sm:$0xff]
    %v119 = vld [vmem:[#allocation5 + $0x68] sm:$0xff]
    %v120 = vld [vmem:[#allocation5 + $0x70] sm:$0xff]
    %v121 = vld [vmem:[#allocation5 + $0x78] sm:$0xff]
    %v122 = vld [vmem:[#allocation5 + $0x80] sm:$0xff]
    %v123 = vld [vmem:[#allocation5 + $0x88] sm:$0xff]
    %v124 = vld [vmem:[#allocation5 + $0x90] sm:$0xff]
    %v125 = vld [vmem:[#allocation5 + $0x98] sm:$0xff]
    %v126 = vld [vmem:[#allocation5 + $0xa0] sm:$0xff]
    %v127 = vld [vmem:[#allocation5 + $0xa8] sm:$0xff]
    %v128 = vld [vmem:[#allocation5 + $0xb0] sm:$0xff]
    %v129 = vld [vmem:[#allocation5 + $0xb8] sm:$0xff]
    %v130 = vld [vmem:[#allocation5 + $0xc0] sm:$0xff]
    %v131 = vld [vmem:[#allocation5 + $0xc8] sm:$0xff]
    %v132 = vld [vmem:[#allocation5 + $0xd0] sm:$0xff]
    %v133 = vld [vmem:[#allocation5 + $0xd8] sm:$0xff]
    %v134 = vld [vmem:[#allocation5 + $0xe0] sm:$0xff]
    %v135 = vld [vmem:[#allocation5 + $0xe8] sm:$0xff]
    %v136 = vld [vmem:[#allocation5 + $0xf0] sm:$0xff]
    %v137 = vld [vmem:[#allocation5 + $0xf8] sm:$0xff]
    %v138 = vld [vmem:[#allocation5 + $0x100] sm:$0xff]
    %v139 = vld [vmem:[#allocation5 + $0x108] sm:$0xff]
    %v140 = vld [vmem:[#allocation5 + $0x110] sm:$0xff]
    %v141 = vld [vmem:[#allocation5 + $0x118] sm:$0xff]
    %v142 = vld [vmem:[#allocation5 + $0x120] sm:$0xff]
    %v143 = vld [vmem:[#allocation5 + $0x128] sm:$0xff]
    %v144 = vld [vmem:[#allocation5 + $0x130] sm:$0xff]
    %v145 = vld [vmem:[#allocation5 + $0x138] sm:$0xff]
    %v146 = vld [vmem:[#allocation5 + $0x140] sm:$0xff]
    %v147 = vld [vmem:[#allocation5 + $0x148] sm:$0xff]
    %v148 = vld [vmem:[#allocation5 + $0x150] sm:$0xff]
    %v149 = vld [vmem:[#allocation5 + $0x158] sm:$0xff]
    %v150 = vld [vmem:[#allocation5 + $0x160] sm:$0xff]
    %v151 = vld [vmem:[#allocation5 + $0x168] sm:$0xff]
    %v152 = vld [vmem:[#allocation5 + $0x170] sm:$0xff]
    %v153 = vld [vmem:[#allocation5 + $0x178] sm:$0xff]
    %v154 = vld [vmem:[#allocation5 + $0x180] sm:$0xff]
    %v155 = vld [vmem:[#allocation5 + $0x188] sm:$0xff]
    %v156 = vld [vmem:[#allocation5 + $0x190] sm:$0xff]
    %v157 = vld [vmem:[#allocation5 + $0x198] sm:$0xff]
    %v158 = vld [vmem:[#allocation5 + $0x1a0] sm:$0xff]
    %v159 = vld [vmem:[#allocation5 + $0x1a8] sm:$0xff]
    %v160 = vld [vmem:[#allocation5 + $0x1b0] sm:$0xff]
    %v161 = vld [vmem:[#allocation5 + $0x1b8] sm:$0xff]
    %v162 = vld [vmem:[#allocation5 + $0x1c0] sm:$0xff]
    %v163 = vld [vmem:[#allocation5 + $0x1c8] sm:$0xff]
    %v164 = vld [vmem:[#allocation5 + $0x1d0] sm:$0xff]
    %v165 = vld [vmem:[#allocation5 + $0x1d8] sm:$0xff]
    %v166 = vld [vmem:[#allocation5 + $0x1e0] sm:$0xff]
    %v167 = vld [vmem:[#allocation5 + $0x1e8] sm:$0xff]
    %v168 = vld [vmem:[#allocation5 + $0x1f0] sm:$0xff]
    %v169 = vld [vmem:[#allocation5 + $0x1f8] sm:$0xff]
    %v170 = vld [vmem:[#allocation5 + $0x200] sm:$0xff]
    %v171 = vld [vmem:[#allocation5 + $0x208] sm:$0xff]
    %v172 = vld [vmem:[#allocation5 + $0x210] sm:$0xff]
    %v173 = vld [vmem:[#allocation5 + $0x218] sm:$0xff]
    %v174 = vld [vmem:[#allocation5 + $0x220] sm:$0xff]
    %v175 = vld [vmem:[#allocation5 + $0x228] sm:$0xff]
    %v176 = vld [vmem:[#allocation5 + $0x230] sm:$0xff]
    %v177 = vld [vmem:[#allocation5 + $0x238] sm:$0xff]
    %v178 = vld [vmem:[#allocation5 + $0x240] sm:$0xff]
    %v179 = vld [vmem:[#allocation5 + $0x248] sm:$0xff]
    %v180 = vld [vmem:[#allocation5 + $0x250] sm:$0xff]
    %v181 = vld [vmem:[#allocation5 + $0x258] sm:$0xff]
    %v182 = vld [vmem:[#allocation5 + $0x260] sm:$0xff]
    %v183 = vld [vmem:[#allocation5 + $0x268] sm:$0xff]
    %v184 = vld [vmem:[#allocation5 + $0x270] sm:$0xff]
    %v185 = vld [vmem:[#allocation5 + $0x278] sm:$0xff]
    %v186 = vld [vmem:[#allocation5 + $0x280] sm:$0xff]
    %v187 = vld [vmem:[#allocation5 + $0x288] sm:$0xff]
    %v188 = vld [vmem:[#allocation5 + $0x290] sm:$0xff]
    %v189 = vld [vmem:[#allocation5 + $0x298] sm:$0xff]
    %v190 = vld [vmem:[#allocation5 + $0x2a0] sm:$0xff]
    %v191 = vld [vmem:[#allocation5 + $0x2a8] sm:$0xff]
    %v192 = vld [vmem:[#allocation5 + $0x2b0] sm:$0xff]
    %v193 = vld [vmem:[#allocation5 + $0x2b8] sm:$0xff]
    %v194 = vld [vmem:[#allocation5 + $0x2c0] sm:$0xff]
    %v195 = vld [vmem:[#allocation5 + $0x2c8] sm:$0xff]
    %v196 = vld [vmem:[#allocation5 + $0x2d0] sm:$0xff]
    %v197 = vld [vmem:[#allocation5 + $0x2d8] sm:$0xff]
    %v198 = vld [vmem:[#allocation5 + $0x2e0] sm:$0xff]
    %v199 = vld [vmem:[#allocation5 + $0x2e8] sm:$0xff]
    %v200 = vld [vmem:[#allocation5 + $0x2f0] sm:$0xff]
    %v201 = vld [vmem:[#allocation5 + $0x2f8] sm:$0xff]
    %v202 = vld [vmem:[#allocation5 + $0x300] sm:$0x77]
    %v203 = vld [vmem:[%s2] sm:$0x3]
    %v205 = vlaneseq
    %v206 = vshrl.u32 %v205, 7
    %v207 = vsub.s32 0, %v206
    %v208 = vrot.slane %v203, %v207
    %v209 = vlaneseq
    %v210 = vshrl.u32 %v209, 7
    %v211 = vsub.s32 1, %v210
    %v212 = vrot.slane %v203, %v211
    %v231 = vunpack.c.l.b16 %v90
    %v232 = vunpack.c.h.b16 %v90
    %v233 = vunpack.c.l.b16 %v91
    %v234 = vunpack.c.h.b16 %v91
    %v235 = vunpack.c.l.b16 %v92
    %v236 = vunpack.c.h.b16 %v92
    %v237 = vunpack.c.l.b16 %v93
    %v238 = vunpack.c.l.b16 %v94
    %v239 = vunpack.c.h.b16 %v94
    %v240 = vunpack.c.l.b16 %v95
    %v241 = vunpack.c.h.b16 %v95
    %v242 = vunpack.c.l.b16 %v96
    %v243 = vunpack.c.h.b16 %v96
    %v244 = vunpack.c.l.b16 %v97
    %v245 = vunpack.c.l.b16 %v98
    %v246 = vunpack.c.h.b16 %v98
    %v247 = vunpack.c.l.b16 %v99
    %v248 = vunpack.c.h.b16 %v99
    %v249 = vunpack.c.l.b16 %v100
    %v250 = vunpack.c.h.b16 %v100
    %v251 = vunpack.c.l.b16 %v101
    %v252 = vunpack.c.l.b16 %v102
    %v253 = vunpack.c.h.b16 %v102
    %v254 = vunpack.c.l.b16 %v103
    %v255 = vunpack.c.h.b16 %v103
    %v256 = vunpack.c.l.b16 %v104
    %v257 = vunpack.c.h.b16 %v104
    %v258 = vunpack.c.l.b16 %v105
    %v259 = vpack.c.b16 %v238, %v231
    %v260 = vpack.c.b16 %v239, %v232
    %v261 = vpack.c.b16 %v240, %v233
    %v262 = vpack.c.b16 %v241, %v234
    %v263 = vpack.c.b16 %v242, %v235
    %v264 = vpack.c.b16 %v243, %v236
    %v265 = vpack.c.b16 %v244, %v237
    %v266 = vpack.c.b16 %v252, %v245
    %v267 = vpack.c.b16 %v253, %v246
    %v268 = vpack.c.b16 %v254, %v247
    %v269 = vpack.c.b16 %v255, %v248
    %v270 = vpack.c.b16 %v256, %v249
    %v271 = vpack.c.b16 %v257, %v250
    %v272 = vpack.c.b16 %v258, %v251
    %v382 = vunpack.c.l.b16 %v106
    %v383 = vunpack.c.h.b16 %v106
    %v384 = vunpack.c.l.b16 %v107
    %v385 = vunpack.c.h.b16 %v107
    %v386 = vunpack.c.l.b16 %v108
    %v387 = vunpack.c.h.b16 %v108
    %v388 = vunpack.c.l.b16 %v109
    %v389 = vunpack.c.h.b16 %v109
    %v390 = vunpack.c.l.b16 %v110
    %v391 = vunpack.c.h.b16 %v110
    %v392 = vunpack.c.l.b16 %v111
    %v393 = vunpack.c.h.b16 %v111
    %v394 = vunpack.c.l.b16 %v112
    %v395 = vunpack.c.h.b16 %v112
    %v396 = vunpack.c.l.b16 %v113
    %v397 = vunpack.c.h.b16 %v113
    %v398 = vunpack.c.l.b16 %v114
    %v399 = vunpack.c.h.b16 %v114
    %v400 = vunpack.c.l.b16 %v115
    %v401 = vunpack.c.h.b16 %v115
    %v402 = vunpack.c.l.b16 %v116
    %v403 = vunpack.c.h.b16 %v116
    %v404 = vunpack.c.l.b16 %v117
    %v405 = vunpack.c.h.b16 %v117
    %v406 = vunpack.c.l.b16 %v118
    %v407 = vunpack.c.h.b16 %v118
    %v408 = vunpack.c.l.b16 %v119
    %v409 = vunpack.c.h.b16 %v119
    %v410 = vunpack.c.l.b16 %v120
    %v411 = vunpack.c.h.b16 %v120
    %v412 = vunpack.c.l.b16 %v121
    %v413 = vunpack.c.h.b16 %v121
    %v414 = vunpack.c.l.b16 %v122
    %v415 = vunpack.c.h.b16 %v122
    %v416 = vunpack.c.l.b16 %v123
    %v417 = vunpack.c.h.b16 %v123
    %v418 = vunpack.c.l.b16 %v124
    %v419 = vunpack.c.h.b16 %v124
    %v420 = vunpack.c.l.b16 %v125
    %v421 = vunpack.c.h.b16 %v125
    %v422 = vunpack.c.l.b16 %v126
    %v423 = vunpack.c.h.b16 %v126
    %v424 = vunpack.c.l.b16 %v127
    %v425 = vunpack.c.h.b16 %v127
    %v426 = vunpack.c.l.b16 %v128
    %v427 = vunpack.c.h.b16 %v128
    %v428 = vunpack.c.l.b16 %v129
    %v429 = vunpack.c.h.b16 %v129
    %v430 = vunpack.c.l.b16 %v130
    %v431 = vunpack.c.h.b16 %v130
    %v432 = vunpack.c.l.b16 %v131
    %v433 = vunpack.c.h.b16 %v131
    %v434 = vunpack.c.l.b16 %v132
    %v435 = vunpack.c.h.b16 %v132
    %v436 = vunpack.c.l.b16 %v133
    %v437 = vunpack.c.h.b16 %v133
    %v438 = vunpack.c.l.b16 %v134
    %v439 = vunpack.c.h.b16 %v134
    %v440 = vunpack.c.l.b16 %v135
    %v441 = vunpack.c.h.b16 %v135
    %v442 = vunpack.c.l.b16 %v136
    %v443 = vunpack.c.h.b16 %v136
    %v444 = vunpack.c.l.b16 %v137
    %v445 = vunpack.c.h.b16 %v137
    %v446 = vunpack.c.l.b16 %v138
    %v447 = vunpack.c.h.b16 %v138
    %v448 = vunpack.c.l.b16 %v139
    %v449 = vunpack.c.h.b16 %v139
    %v450 = vunpack.c.l.b16 %v140
    %v451 = vunpack.c.h.b16 %v140
    %v452 = vunpack.c.l.b16 %v141
    %v453 = vunpack.c.h.b16 %v141
    %v454 = vunpack.c.l.b16 %v142
    %v455 = vunpack.c.h.b16 %v142
    %v456 = vunpack.c.l.b16 %v143
    %v457 = vunpack.c.h.b16 %v143
    %v458 = vunpack.c.l.b16 %v144
    %v459 = vunpack.c.h.b16 %v144
    %v460 = vunpack.c.l.b16 %v145
    %v461 = vunpack.c.h.b16 %v145
    %v462 = vunpack.c.l.b16 %v146
    %v463 = vunpack.c.h.b16 %v146
    %v464 = vunpack.c.l.b16 %v147
    %v465 = vunpack.c.h.b16 %v147
    %v466 = vunpack.c.l.b16 %v148
    %v467 = vunpack.c.h.b16 %v148
    %v468 = vunpack.c.l.b16 %v149
    %v469 = vunpack.c.h.b16 %v149
    %v470 = vunpack.c.l.b16 %v150
    %v471 = vunpack.c.h.b16 %v150
    %v472 = vunpack.c.l.b16 %v151
    %v473 = vunpack.c.h.b16 %v151
    %v474 = vunpack.c.l.b16 %v152
    %v475 = vunpack.c.h.b16 %v152
    %v476 = vunpack.c.l.b16 %v153
    %v477 = vunpack.c.h.b16 %v153
    %v478 = vunpack.c.l.b16 %v154
    %v479 = vunpack.c.h.b16 %v154
    %v480 = vunpack.c.l.b16 %v155
    %v481 = vunpack.c.h.b16 %v155
    %v482 = vunpack.c.l.b16 %v156
    %v483 = vunpack.c.h.b16 %v156
    %v484 = vunpack.c.l.b16 %v157
    %v485 = vunpack.c.h.b16 %v157
    %v486 = vunpack.c.l.b16 %v158
    %v487 = vunpack.c.h.b16 %v158
    %v488 = vunpack.c.l.b16 %v159
    %v489 = vunpack.c.h.b16 %v159
    %v490 = vunpack.c.l.b16 %v160
    %v491 = vunpack.c.h.b16 %v160
    %v492 = vunpack.c.l.b16 %v161
    %v493 = vunpack.c.h.b16 %v161
    %v494 = vunpack.c.l.b16 %v162
    %v495 = vunpack.c.h.b16 %v162
    %v496 = vunpack.c.l.b16 %v163
    %v497 = vunpack.c.h.b16 %v163
    %v498 = vunpack.c.l.b16 %v164
    %v499 = vunpack.c.h.b16 %v164
    %v500 = vunpack.c.l.b16 %v165
    %v501 = vunpack.c.h.b16 %v165
    %v502 = vunpack.c.l.b16 %v166
    %v503 = vunpack.c.h.b16 %v166
    %v504 = vunpack.c.l.b16 %v167
    %v505 = vunpack.c.h.b16 %v167
    %v506 = vunpack.c.l.b16 %v168
    %v507 = vunpack.c.h.b16 %v168
    %v508 = vunpack.c.l.b16 %v169
    %v509 = vunpack.c.h.b16 %v169
    %v510 = vunpack.c.l.b16 %v170
    %v511 = vunpack.c.h.b16 %v170
    %v512 = vunpack.c.l.b16 %v171
    %v513 = vunpack.c.h.b16 %v171
    %v514 = vunpack.c.l.b16 %v172
    %v515 = vunpack.c.h.b16 %v172
    %v516 = vunpack.c.l.b16 %v173
    %v517 = vunpack.c.h.b16 %v173
    %v518 = vunpack.c.l.b16 %v174
    %v519 = vunpack.c.h.b16 %v174
    %v520 = vunpack.c.l.b16 %v175
    %v521 = vunpack.c.h.b16 %v175
    %v522 = vunpack.c.l.b16 %v176
    %v523 = vunpack.c.h.b16 %v176
    %v524 = vunpack.c.l.b16 %v177
    %v525 = vunpack.c.h.b16 %v177
    %v526 = vunpack.c.l.b16 %v178
    %v527 = vunpack.c.h.b16 %v178
    %v528 = vunpack.c.l.b16 %v179
    %v529 = vunpack.c.h.b16 %v179
    %v530 = vunpack.c.l.b16 %v180
    %v531 = vunpack.c.h.b16 %v180
    %v532 = vunpack.c.l.b16 %v181
    %v533 = vunpack.c.h.b16 %v181
    %v534 = vunpack.c.l.b16 %v182
    %v535 = vunpack.c.h.b16 %v182
    %v536 = vunpack.c.l.b16 %v183
    %v537 = vunpack.c.h.b16 %v183
    %v538 = vunpack.c.l.b16 %v184
    %v539 = vunpack.c.h.b16 %v184
    %v540 = vunpack.c.l.b16 %v185
    %v541 = vunpack.c.h.b16 %v185
    %v542 = vunpack.c.l.b16 %v186
    %v543 = vunpack.c.h.b16 %v186
    %v544 = vunpack.c.l.b16 %v187
    %v545 = vunpack.c.h.b16 %v187
    %v546 = vunpack.c.l.b16 %v188
    %v547 = vunpack.c.h.b16 %v188
    %v548 = vunpack.c.l.b16 %v189
    %v549 = vunpack.c.h.b16 %v189
    %v550 = vunpack.c.l.b16 %v190
    %v551 = vunpack.c.h.b16 %v190
    %v552 = vunpack.c.l.b16 %v191
    %v553 = vunpack.c.h.b16 %v191
    %v554 = vunpack.c.l.b16 %v192
    %v555 = vunpack.c.h.b16 %v192
    %v556 = vunpack.c.l.b16 %v193
    %v557 = vunpack.c.h.b16 %v193
    %v558 = vunpack.c.l.b16 %v194
    %v559 = vunpack.c.h.b16 %v194
    %v560 = vunpack.c.l.b16 %v195
    %v561 = vunpack.c.h.b16 %v195
    %v562 = vunpack.c.l.b16 %v196
    %v563 = vunpack.c.h.b16 %v196
    %v564 = vunpack.c.l.b16 %v197
    %v565 = vunpack.c.h.b16 %v197
    %v566 = vunpack.c.l.b16 %v198
    %v567 = vunpack.c.h.b16 %v198
    %v568 = vunpack.c.l.b16 %v199
    %v569 = vunpack.c.h.b16 %v199
    %v570 = vunpack.c.l.b16 %v200
    %v571 = vunpack.c.h.b16 %v200
    %v572 = vunpack.c.l.b16 %v201
    %v573 = vunpack.c.h.b16 %v201
    %v574 = vunpack.c.l.b16 %v202
    %v575 = vunpack.c.h.b16 %v202
    %v576 = vpack.c.b16 %v384, %v382
    %v577 = vpack.c.b16 %v385, %v383
    %v578 = vpack.c.b16 %v388, %v386
    %v579 = vpack.c.b16 %v389, %v387
    %v580 = vpack.c.b16 %v392, %v390
    %v581 = vpack.c.b16 %v393, %v391
    %v582 = vpack.c.b16 %v396, %v394
    %v583 = vpack.c.b16 %v397, %v395
    %v584 = vpack.c.b16 %v400, %v398
    %v585 = vpack.c.b16 %v401, %v399
    %v586 = vpack.c.b16 %v404, %v402
    %v587 = vpack.c.b16 %v405, %v403
    %v588 = vpack.c.b16 %v408, %v406
    %v589 = vpack.c.b16 %v409, %v407
    %v590 = vpack.c.b16 %v412, %v410
    %v591 = vpack.c.b16 %v413, %v411
    %v592 = vpack.c.b16 %v416, %v414
    %v593 = vpack.c.b16 %v417, %v415
    %v594 = vpack.c.b16 %v420, %v418
    %v595 = vpack.c.b16 %v421, %v419
    %v596 = vpack.c.b16 %v424, %v422
    %v597 = vpack.c.b16 %v425, %v423
    %v598 = vpack.c.b16 %v428, %v426
    %v599 = vpack.c.b16 %v429, %v427
    %v600 = vpack.c.b16 %v432, %v430
    %v601 = vpack.c.b16 %v433, %v431
    %v602 = vpack.c.b16 %v436, %v434
    %v603 = vpack.c.b16 %v437, %v435
    %v604 = vpack.c.b16 %v440, %v438
    %v605 = vpack.c.b16 %v441, %v439
    %v606 = vpack.c.b16 %v444, %v442
    %v607 = vpack.c.b16 %v445, %v443
    %v608 = vpack.c.b16 %v448, %v446
    %v609 = vpack.c.b16 %v449, %v447
    %v610 = vpack.c.b16 %v452, %v450
    %v611 = vpack.c.b16 %v453, %v451
    %v612 = vpack.c.b16 %v456, %v454
    %v613 = vpack.c.b16 %v457, %v455
    %v614 = vpack.c.b16 %v460, %v458
    %v615 = vpack.c.b16 %v461, %v459
    %v616 = vpack.c.b16 %v464, %v462
    %v617 = vpack.c.b16 %v465, %v463
    %v618 = vpack.c.b16 %v468, %v466
    %v619 = vpack.c.b16 %v469, %v467
    %v620 = vpack.c.b16 %v472, %v470
    %v621 = vpack.c.b16 %v473, %v471
    %v622 = vpack.c.b16 %v476, %v474
    %v623 = vpack.c.b16 %v477, %v475
    %v624 = vpack.c.b16 %v480, %v478
    %v625 = vpack.c.b16 %v481, %v479
    %v626 = vpack.c.b16 %v484, %v482
    %v627 = vpack.c.b16 %v485, %v483
    %v628 = vpack.c.b16 %v488, %v486
    %v629 = vpack.c.b16 %v489, %v487
    %v630 = vpack.c.b16 %v492, %v490
    %v631 = vpack.c.b16 %v493, %v491
    %v632 = vpack.c.b16 %v496, %v494
    %v633 = vpack.c.b16 %v497, %v495
    %v634 = vpack.c.b16 %v500, %v498
    %v635 = vpack.c.b16 %v501, %v499
    %v636 = vpack.c.b16 %v504, %v502
    %v637 = vpack.c.b16 %v505, %v503
    %v638 = vpack.c.b16 %v508, %v506
    %v639 = vpack.c.b16 %v509, %v507
    %v640 = vpack.c.b16 %v512, %v510
    %v641 = vpack.c.b16 %v513, %v511
    %v642 = vpack.c.b16 %v516, %v514
    %v643 = vpack.c.b16 %v517, %v515
    %v644 = vpack.c.b16 %v520, %v518
    %v645 = vpack.c.b16 %v521, %v519
    %v646 = vpack.c.b16 %v524, %v522
    %v647 = vpack.c.b16 %v525, %v523
    %v648 = vpack.c.b16 %v528, %v526
    %v649 = vpack.c.b16 %v529, %v527
    %v650 = vpack.c.b16 %v532, %v530
    %v651 = vpack.c.b16 %v533, %v531
    %v652 = vpack.c.b16 %v536, %v534
    %v653 = vpack.c.b16 %v537, %v535
    %v654 = vpack.c.b16 %v540, %v538
    %v655 = vpack.c.b16 %v541, %v539
    %v656 = vpack.c.b16 %v544, %v542
    %v657 = vpack.c.b16 %v545, %v543
    %v658 = vpack.c.b16 %v548, %v546
    %v659 = vpack.c.b16 %v549, %v547
    %v660 = vpack.c.b16 %v552, %v550
    %v661 = vpack.c.b16 %v553, %v551
    %v662 = vpack.c.b16 %v556, %v554
    %v663 = vpack.c.b16 %v557, %v555
    %v664 = vpack.c.b16 %v560, %v558
    %v665 = vpack.c.b16 %v561, %v559
    %v666 = vpack.c.b16 %v564, %v562
    %v667 = vpack.c.b16 %v565, %v563
    %v668 = vpack.c.b16 %v568, %v566
    %v669 = vpack.c.b16 %v569, %v567
    %v670 = vpack.c.b16 %v572, %v570
    %v671 = vpack.c.b16 %v573, %v571
    %v672 = vpack.c.b16 %v574, %v574
    %v673 = vpack.c.b16 %v575, %v575
    %vm770 = vcmask 39936
    %v772 = vsel %vm770, %v265, 0
    %v775 = vsel %vm770, %v272, 0
    %vm777 = vcmask 1041408
    %vm778 = vcmask 1042432
    %v779 = vsel %vm777, 4294967295, 65535
    %v780 = vsel %vm778, %v779, 0
    %v782 = vand.u32 %v672, %v780
    %v785 = vand.u32 %v673, %v780
    %787 = vmatprep.subr.bf16.mxu0 %v577
    %788 = vmatpush1.bf16.msra.mxu0 %v576
    %789 = vmatprep.subr.bf16.mxu0 %v579
    %790 = vmatpush1.bf16.msra.mxu0 %v578
    %791 = vmatprep.subr.bf16.mxu0 %v581
    %792 = vmatpush1.bf16.msra.mxu0 %v580
    %793 = vmatprep.subr.bf16.mxu0 %v583
    %794 = vmatpush1.bf16.msra.mxu0 %v582
    %795 = vmatprep.subr.bf16.mxu0 %v585
    %796 = vmatpush1.bf16.msra.mxu0 %v584
    %797 = vmatprep.subr.bf16.mxu0 %v587
    %798 = vmatpush1.bf16.msra.mxu0 %v586
    %799 = vmatprep.subr.bf16.mxu0 %v589
    %800 = vmatpush1.bf16.msra.mxu0 %v588
    %801 = vmatprep.subr.bf16.mxu0 %v591
    %802 = vmatpush1.bf16.msra.mxu0 %v590
    %803 = vmatprep.subr.bf16.mxu0 %v593
    %804 = vmatpush1.bf16.msra.mxu0 %v592
    %805 = vmatprep.subr.bf16.mxu0 %v595
    %806 = vmatpush1.bf16.msra.mxu0 %v594
    %807 = vmatprep.subr.bf16.mxu0 %v597
    %808 = vmatpush1.bf16.msra.mxu0 %v596
    %809 = vmatprep.subr.bf16.mxu0 %v599
    %810 = vmatpush1.bf16.msra.mxu0 %v598
    %811 = vmatprep.subr.bf16.mxu0 %v601
    %812 = vmatpush1.bf16.msra.mxu0 %v600
    %813 = vmatprep.subr.bf16.mxu0 %v603
    %814 = vmatpush1.bf16.msra.mxu0 %v602
    %815 = vmatprep.subr.bf16.mxu0 %v605
    %816 = vmatpush1.bf16.msra.mxu0 %v604
    %817 = vmatprep.subr.bf16.mxu0 %v607
    %818 = vmatpush1.bf16.msra.mxu0 %v606
    %819 = vmatprep.mubr.bf16.mxu0 %v260
    %820 = vmatmul.mubr.bf16.gmra.mrb[0].mxu0 %v259
    %v821 = vpop.f32.mrb[0].mxu0
    %v822 = vadd.f32 %v208, %v821
    %v823 = vpop.f32.mrb[0].mxu0
    %v824 = vadd.f32 %v212, %v823
    %v825 = vpop.f32.mrb[0].mxu0
    %v826 = vadd.f32 %v208, %v825
    %v827 = vpop.f32.mrb[0].mxu0
    %v828 = vadd.f32 %v212, %v827
    %829 = vmatprep.mubr.bf16.mxu0 %v267
    %830 = vmatmul.mubr.bf16.gmra.mrb[0].mxu0 %v266
    %v831 = vpop.f32.mrb[0].mxu0
    %v832 = vadd.f32 %v208, %v831
    %v833 = vpop.f32.mrb[0].mxu0
    %v834 = vadd.f32 %v212, %v833
    %v835 = vpop.f32.mrb[0].mxu0
    %v836 = vadd.f32 %v208, %v835
    %v837 = vpop.f32.mrb[0].mxu0
    %v838 = vadd.f32 %v212, %v837
    %839 = vdwg.mxu0
    %840 = vmatprep.subr.bf16.mxu0 %v609
    %841 = vmatpush1.bf16.msra.mxu0 %v608
    %842 = vmatprep.subr.bf16.mxu0 %v611
    %843 = vmatpush1.bf16.msra.mxu0 %v610
    %844 = vmatprep.subr.bf16.mxu0 %v613
    %845 = vmatpush1.bf16.msra.mxu0 %v612
    %846 = vmatprep.subr.bf16.mxu0 %v615
    %847 = vmatpush1.bf16.msra.mxu0 %v614
    %848 = vmatprep.subr.bf16.mxu0 %v617
    %849 = vmatpush1.bf16.msra.mxu0 %v616
    %850 = vmatprep.subr.bf16.mxu0 %v619
    %851 = vmatpush1.bf16.msra.mxu0 %v618
    %852 = vmatprep.subr.bf16.mxu0 %v621
    %853 = vmatpush1.bf16.msra.mxu0 %v620
    %854 = vmatprep.subr.bf16.mxu0 %v623
    %855 = vmatpush1.bf16.msra.mxu0 %v622
    %856 = vmatprep.subr.bf16.mxu0 %v625
    %857 = vmatpush1.bf16.msra.mxu0 %v624
    %858 = vmatprep.subr.bf16.mxu0 %v627
    %859 = vmatpush1.bf16.msra.mxu0 %v626
    %860 = vmatprep.subr.bf16.mxu0 %v629
    %861 = vmatpush1.bf16.msra.mxu0 %v628
    %862 = vmatprep.subr.bf16.mxu0 %v631
    %863 = vmatpush1.bf16.msra.mxu0 %v630
    %864 = vmatprep.subr.bf16.mxu0 %v633
    %865 = vmatpush1.bf16.msra.mxu0 %v632
    %866 = vmatprep.subr.bf16.mxu0 %v635
    %867 = vmatpush1.bf16.msra.mxu0 %v634
    %868 = vmatprep.subr.bf16.mxu0 %v637
    %869 = vmatpush1.bf16.msra.mxu0 %v636
    %870 = vmatprep.subr.bf16.mxu0 %v639
    %871 = vmatpush1.bf16.msra.mxu0 %v638
    %872 = vmatprep.mubr.bf16.mxu0 %v262
    %873 = vmatmul.mubr.bf16.gmra.mrb[0].mxu0 %v261
    %v874 = vpop.f32.mrb[0].mxu0
    %v875 = vadd.f32 %v822, %v874
    %v876 = vpop.f32.mrb[0].mxu0
    %v877 = vadd.f32 %v824, %v876
    %v878 = vpop.f32.mrb[0].mxu0
    %v879 = vadd.f32 %v826, %v878
    %v880 = vpop.f32.mrb[0].mxu0
    %v881 = vadd.f32 %v828, %v880
    %882 = vmatprep.mubr.bf16.mxu0 %v269
    %883 = vmatmul.mubr.bf16.gmra.mrb[0].mxu0 %v268
    %v884 = vpop.f32.mrb[0].mxu0
    %v885 = vadd.f32 %v832, %v884
    %v886 = vpop.f32.mrb[0].mxu0
    %v887 = vadd.f32 %v834, %v886
    %v888 = vpop.f32.mrb[0].mxu0
    %v889 = vadd.f32 %v836, %v888
    %v890 = vpop.f32.mrb[0].mxu0
    %v891 = vadd.f32 %v838, %v890
    %892 = vdwg.mxu0
    %893 = vmatprep.subr.bf16.mxu0 %v641
    %894 = vmatpush1.bf16.msra.mxu0 %v640
    %895 = vmatprep.subr.bf16.mxu0 %v643
    %896 = vmatpush1.bf16.msra.mxu0 %v642
    %897 = vmatprep.subr.bf16.mxu0 %v645
    %898 = vmatpush1.bf16.msra.mxu0 %v644
    %899 = vmatprep.subr.bf16.mxu0 %v647
    %900 = vmatpush1.bf16.msra.mxu0 %v646
    %901 = vmatprep.subr.bf16.mxu0 %v649
    %902 = vmatpush1.bf16.msra.mxu0 %v648
    %903 = vmatprep.subr.bf16.mxu0 %v651
    %904 = vmatpush1.bf16.msra.mxu0 %v650
    %905 = vmatprep.subr.bf16.mxu0 %v653
    %906 = vmatpush1.bf16.msra.mxu0 %v652
    %907 = vmatprep.subr.bf16.mxu0 %v655
    %908 = vmatpush1.bf16.msra.mxu0 %v654
    %909 = vmatprep.subr.bf16.mxu0 %v657
    %910 = vmatpush1.bf16.msra.mxu0 %v656
    %911 = vmatprep.subr.bf16.mxu0 %v659
    %912 = vmatpush1.bf16.msra.mxu0 %v658
    %913 = vmatprep.subr.bf16.mxu0 %v661
    %914 = vmatpush1.bf16.msra.mxu0 %v660
    %915 = vmatprep.subr.bf16.mxu0 %v663
    %916 = vmatpush1.bf16.msra.mxu0 %v662
    %917 = vmatprep.subr.bf16.mxu0 %v665
    %918 = vmatpush1.bf16.msra.mxu0 %v664
    %919 = vmatprep.subr.bf16.mxu0 %v667
    %920 = vmatpush1.bf16.msra.mxu0 %v666
    %921 = vmatprep.subr.bf16.mxu0 %v669
    %922 = vmatpush1.bf16.msra.mxu0 %v668
    %923 = vmatprep.subr.bf16.mxu0 %v671
    %924 = vmatpush1.bf16.msra.mxu0 %v670
    %925 = vmatprep.mubr.bf16.mxu0 %v264
    %926 = vmatmul.mubr.bf16.gmra.mrb[0].mxu0 %v263
    %v927 = vpop.f32.mrb[0].mxu0
    %v928 = vadd.f32 %v875, %v927
    %v929 = vpop.f32.mrb[0].mxu0
    %v930 = vadd.f32 %v877, %v929
    %v931 = vpop.f32.mrb[0].mxu0
    %v932 = vadd.f32 %v879, %v931
    %v933 = vpop.f32.mrb[0].mxu0
    %v934 = vadd.f32 %v881, %v933
    %935 = vmatprep.mubr.bf16.mxu0 %v271
    %936 = vmatmul.mubr.bf16.gmra.mrb[0].mxu0 %v270
    %v937 = vpop.f32.mrb[0].mxu0
    %v938 = vadd.f32 %v885, %v937
    %v939 = vpop.f32.mrb[0].mxu0
    %v940 = vadd.f32 %v887, %v939
    %v941 = vpop.f32.mrb[0].mxu0
    %v942 = vadd.f32 %v889, %v941
    %v943 = vpop.f32.mrb[0].mxu0
    %v944 = vadd.f32 %v891, %v943
    %945 = vdwg.mxu0
    %946 = vmatprep.subr.bf16.mxu0 %v785
    %947 = vmatpush1.bf16.msra.mxu0 %v782
    %948 = vmatprep.subr.bf16.mxu0 0
    %949 = vmatpush1.bf16.msra.mxu0 0
    %950 = vmatprep.subr.bf16.mxu0 0
    %951 = vmatpush1.bf16.msra.mxu0 0
    %952 = vmatprep.subr.bf16.mxu0 0
    %953 = vmatpush1.bf16.msra.mxu0 0
    %954 = vmatprep.subr.bf16.mxu0 0
    %955 = vmatpush1.bf16.msra.mxu0 0
    %956 = vmatprep.subr.bf16.mxu0 0
    %957 = vmatpush1.bf16.msra.mxu0 0
    %958 = vmatprep.subr.bf16.mxu0 0
    %959 = vmatpush1.bf16.msra.mxu0 0
    %960 = vmatprep.subr.bf16.mxu0 0
    %961 = vmatpush1.bf16.msra.mxu0 0
    %962 = vmatprep.subr.bf16.mxu0 0
    %963 = vmatpush1.bf16.msra.mxu0 0
    %964 = vmatprep.subr.bf16.mxu0 0
    %965 = vmatpush1.bf16.msra.mxu0 0
    %966 = vmatprep.subr.bf16.mxu0 0
    %967 = vmatpush1.bf16.msra.mxu0 0
    %968 = vmatprep.subr.bf16.mxu0 0
    %969 = vmatpush1.bf16.msra.mxu0 0
    %970 = vmatprep.subr.bf16.mxu0 0
    %971 = vmatpush1.bf16.msra.mxu0 0
    %972 = vmatprep.subr.bf16.mxu0 0
    %973 = vmatpush1.bf16.msra.mxu0 0
    %974 = vmatprep.subr.bf16.mxu0 0
    %975 = vmatpush1.bf16.msra.mxu0 0
    %976 = vmatprep.subr.bf16.mxu0 0
    %977 = vmatpush1.bf16.msra.mxu0 0
    %978 = vmatprep.mubr.bf16.mxu0 0
    %979 = vmatmul.mubr.bf16.gmra.mrb[0].mxu0 %v772
    %v980 = vpop.f32.mrb[0].mxu0
    %v981 = vadd.f32 %v928, %v980
    %v982 = vpop.f32.mrb[0].mxu0
    %v983 = vadd.f32 %v930, %v982
    %v984 = vpop.f32.mrb[0].mxu0
    %v985 = vadd.f32 %v932, %v984
    %v986 = vpop.f32.mrb[0].mxu0
    %v987 = vadd.f32 %v934, %v986
    %988 = vmatprep.mubr.bf16.mxu0 0
    %989 = vmatmul.mubr.bf16.gmra.mrb[0].mxu0 %v775
    %v990 = vpop.f32.mrb[0].mxu0
    %v991 = vadd.f32 %v938, %v990
    %v992 = vpop.f32.mrb[0].mxu0
    %v993 = vadd.f32 %v940, %v992
    %v994 = vpop.f32.mrb[0].mxu0
    %v995 = vadd.f32 %v942, %v994
    %v996 = vpop.f32.mrb[0].mxu0
    %v997 = vadd.f32 %v944, %v996
    %998 = vdwg.mxu0
    %v999 = vmax.f32 %v981, 0.0
    %v1000 = vmax.f32 %v983, 0.0
    %v1001 = vmax.f32 %v985, 0.0
    %v1002 = vmax.f32 %v987, 0.0
    %v1003 = vmax.f32 %v991, 0.0
    %v1004 = vmax.f32 %v993, 0.0
    %v1005 = vmax.f32 %v995, 0.0
    %v1006 = vmax.f32 %v997, 0.0
    %v1007 = vpack.c.bf16 %v1001, %v999
    %v1008 = vpack.c.bf16 %v1002, %v1000
    %v1009 = vpack.c.bf16 %v1005, %v1003
    %v1010 = vpack.c.bf16 %v1006, %v1004
    %v1011 = vld [vmem:[#allocation7] sm:$0xf]
    %v1012 = vld [vmem:[#allocation7 + $0x4] sm:$0xf]
    %v1013 = vld [vmem:[#allocation7 + $0x8] sm:$0xf]
    %v1014 = vld [vmem:[#allocation7 + $0xc] sm:$0xf]
    %v1015 = vld [vmem:[#allocation7 + $0x10] sm:$0xf]
    %v1016 = vld [vmem:[#allocation7 + $0x14] sm:$0xf]
    %v1017 = vld [vmem:[#allocation7 + $0x18] sm:$0xf]
    %v1018 = vld [vmem:[#allocation7 + $0x1c] sm:$0xf]
    %v1019 = vld [vmem:[#allocation7 + $0x20] sm:$0xf]
    %v1020 = vld [vmem:[#allocation7 + $0x24] sm:$0xf]
    %v1021 = vld [vmem:[#allocation7 + $0x28] sm:$0xf]
    %v1022 = vld [vmem:[#allocation7 + $0x2c] sm:$0xf]
    %v1023 = vld [vmem:[#allocation7 + $0x30] sm:$0xf]
    %v1024 = vld [vmem:[#allocation7 + $0x34] sm:$0xf]
    %v1025 = vld [vmem:[#allocation7 + $0x38] sm:$0xf]
    %v1026 = vld [vmem:[#allocation7 + $0x3c] sm:$0xf]
    %v1027 = vld [vmem:[#allocation7 + $0x40] sm:$0xf]
    %v1028 = vld [vmem:[#allocation7 + $0x44] sm:$0xf]
    %v1029 = vld [vmem:[#allocation7 + $0x48] sm:$0xf]
    %v1030 = vld [vmem:[#allocation7 + $0x4c] sm:$0xf]
    %v1031 = vld [vmem:[#allocation7 + $0x50] sm:$0xf]
    %v1032 = vld [vmem:[#allocation7 + $0x54] sm:$0xf]
    %v1033 = vld [vmem:[#allocation7 + $0x58] sm:$0xf]
    %v1034 = vld [vmem:[#allocation7 + $0x5c] sm:$0xf]
    %v1035 = vld [vmem:[#allocation7 + $0x60] sm:$0xf]
    %v1036 = vld [vmem:[#allocation7 + $0x64] sm:$0xf]
    %v1037 = vld [vmem:[#allocation7 + $0x68] sm:$0xf]
    %v1038 = vld [vmem:[#allocation7 + $0x6c] sm:$0xf]
    %v1039 = vld [vmem:[#allocation7 + $0x70] sm:$0xf]
    %v1040 = vld [vmem:[#allocation7 + $0x74] sm:$0xf]
    %v1041 = vld [vmem:[#allocation7 + $0x78] sm:$0xf]
    %v1042 = vld [vmem:[#allocation7 + $0x7c] sm:$0xf]
    %v1043 = vld [vmem:[%s4] sm:$0x1]
    %v1045 = vlaneseq
    %v1046 = vshrl.u32 %v1045, 7
    %v1047 = vsub.s32 0, %v1046
    %v1048 = vrot.slane %v1043, %v1047
    %v1082 = vunpack.c.l.b16 %v1011
    %v1083 = vunpack.c.l.b16 %v1012
    %v1084 = vunpack.c.l.b16 %v1013
    %v1085 = vunpack.c.l.b16 %v1014
    %v1086 = vunpack.c.l.b16 %v1015
    %v1087 = vunpack.c.l.b16 %v1016
    %v1088 = vunpack.c.l.b16 %v1017
    %v1089 = vunpack.c.l.b16 %v1018
    %v1090 = vunpack.c.l.b16 %v1019
    %v1091 = vunpack.c.l.b16 %v1020
    %v1092 = vunpack.c.l.b16 %v1021
    %v1093 = vunpack.c.l.b16 %v1022
    %v1094 = vunpack.c.l.b16 %v1023
    %v1095 = vunpack.c.l.b16 %v1024
    %v1096 = vunpack.c.l.b16 %v1025
    %v1097 = vunpack.c.l.b16 %v1026
    %v1098 = vunpack.c.l.b16 %v1027
    %v1099 = vunpack.c.l.b16 %v1028
    %v1100 = vunpack.c.l.b16 %v1029
    %v1101 = vunpack.c.l.b16 %v1030
    %v1102 = vunpack.c.l.b16 %v1031
    %v1103 = vunpack.c.l.b16 %v1032
    %v1104 = vunpack.c.l.b16 %v1033
    %v1105 = vunpack.c.l.b16 %v1034
    %v1106 = vunpack.c.l.b16 %v1035
    %v1107 = vunpack.c.l.b16 %v1036
    %v1108 = vunpack.c.l.b16 %v1037
    %v1109 = vunpack.c.l.b16 %v1038
    %v1110 = vunpack.c.l.b16 %v1039
    %v1111 = vunpack.c.l.b16 %v1040
    %v1112 = vunpack.c.l.b16 %v1041
    %v1113 = vunpack.c.l.b16 %v1042
    %v1114 = vpack.c.b16 %v1083, %v1082
    %v1115 = vpack.c.b16 %v1085, %v1084
    %v1116 = vpack.c.b16 %v1087, %v1086
    %v1117 = vpack.c.b16 %v1089, %v1088
    %v1118 = vpack.c.b16 %v1091, %v1090
    %v1119 = vpack.c.b16 %v1093, %v1092
    %v1120 = vpack.c.b16 %v1095, %v1094
    %v1121 = vpack.c.b16 %v1097, %v1096
    %v1122 = vpack.c.b16 %v1099, %v1098
    %v1123 = vpack.c.b16 %v1101, %v1100
    %v1124 = vpack.c.b16 %v1103, %v1102
    %v1125 = vpack.c.b16 %v1105, %v1104
    %v1126 = vpack.c.b16 %v1107, %v1106
    %v1127 = vpack.c.b16 %v1109, %v1108
    %v1128 = vpack.c.b16 %v1111, %v1110
    %v1129 = vpack.c.b16 %v1113, %v1112
    %1146 = vmatprep.subr.bf16.mxu0 0
    %1147 = vmatpush1.bf16.msra.mxu0 %v1114
    %1148 = vmatprep.subr.bf16.mxu0 0
    %1149 = vmatpush1.bf16.msra.mxu0 %v1115
    %1150 = vmatprep.subr.bf16.mxu0 0
    %1151 = vmatpush1.bf16.msra.mxu0 %v1116
    %1152 = vmatprep.subr.bf16.mxu0 0
    %1153 = vmatpush1.bf16.msra.mxu0 %v1117
    %1154 = vmatprep.subr.bf16.mxu0 0
    %1155 = vmatpush1.bf16.msra.mxu0 %v1118
    %1156 = vmatprep.subr.bf16.mxu0 0
    %1157 = vmatpush1.bf16.msra.mxu0 %v1119
    %1158 = vmatprep.subr.bf16.mxu0 0
    %1159 = vmatpush1.bf16.msra.mxu0 %v1120
    %1160 = vmatprep.subr.bf16.mxu0 0
    %1161 = vmatpush1.bf16.msra.mxu0 %v1121
    %1162 = vmatprep.subr.bf16.mxu0 0
    %1163 = vmatpush1.bf16.msra.mxu0 %v1122
    %1164 = vmatprep.subr.bf16.mxu0 0
    %1165 = vmatpush1.bf16.msra.mxu0 %v1123
    %1166 = vmatprep.subr.bf16.mxu0 0
    %1167 = vmatpush1.bf16.msra.mxu0 %v1124
    %1168 = vmatprep.subr.bf16.mxu0 0
    %1169 = vmatpush1.bf16.msra.mxu0 %v1125
    %1170 = vmatprep.subr.bf16.mxu0 0
    %1171 = vmatpush1.bf16.msra.mxu0 %v1126
    %1172 = vmatprep.subr.bf16.mxu0 0
    %1173 = vmatpush1.bf16.msra.mxu0 %v1127
    %1174 = vmatprep.subr.bf16.mxu0 0
    %1175 = vmatpush1.bf16.msra.mxu0 %v1128
    %1176 = vmatprep.subr.bf16.mxu0 0
    %1177 = vmatpush1.bf16.msra.mxu0 %v1129
    %1178 = vmatprep.mubr.bf16.mxu0 %v1008
    %1179 = vmatmul.mubr.bf16.gmra.mrb[0].mxu0 %v1007
    %v1180 = vpop.f32.mrb[0].mxu0
    %v1181 = vadd.f32 %v1048, %v1180
    %v1182 = vpop.f32.mrb[0].mxu0
    %v1183 = vpop.f32.mrb[0].mxu0
    %v1184 = vadd.f32 %v1048, %v1183
    %v1185 = vpop.f32.mrb[0].mxu0
    %1186 = vmatprep.mubr.bf16.mxu0 %v1010
    %1187 = vmatmul.mubr.bf16.gmra.mrb[0].mxu0 %v1009
    %v1188 = vpop.f32.mrb[0].mxu0
    %v1189 = vadd.f32 %v1048, %v1188
    %v1190 = vpop.f32.mrb[0].mxu0
    %v1191 = vpop.f32.mrb[0].mxu0
    %v1192 = vadd.f32 %v1048, %v1191
    %v1193 = vpop.f32.mrb[0].mxu0
    %1194 = vdwg.mxu0
    %v1195 = vmax.f32 %v1181, 0.0
    %v1196 = vmax.f32 %v1184, 0.0
    %v1197 = vmax.f32 %v1189, 0.0
    %v1198 = vmax.f32 %v1192, 0.0
    %v1199 = vpack.c.bf16 %v1196, %v1195
    %v1200 = vpack.c.bf16 %v1198, %v1197
    %v1201 = vld [vmem:[#allocation8] sm:$0xf]
    %v1202 = vld [vmem:[#allocation8 + $0x4] sm:$0xf]
    %v1203 = vld [vmem:[#allocation8 + $0x8] sm:$0xf]
    %v1204 = vld [vmem:[#allocation8 + $0xc] sm:$0xf]
    %v1205 = vld [vmem:[#allocation8 + $0x10] sm:$0xf]
    %v1206 = vld [vmem:[#allocation8 + $0x14] sm:$0xf]
    %v1207 = vld [vmem:[#allocation8 + $0x18] sm:$0xf]
    %v1208 = vld [vmem:[#allocation8 + $0x1c] sm:$0xf]
    %v1209 = vld [vmem:[#allocation8 + $0x20] sm:$0xf]
    %v1210 = vld [vmem:[#allocation8 + $0x24] sm:$0xf]
    %v1211 = vld [vmem:[#allocation8 + $0x28] sm:$0xf]
    %v1212 = vld [vmem:[#allocation8 + $0x2c] sm:$0xf]
    %v1213 = vld [vmem:[#allocation8 + $0x30] sm:$0xf]
    %v1214 = vld [vmem:[#allocation8 + $0x34] sm:$0xf]
    %v1215 = vld [vmem:[#allocation8 + $0x38] sm:$0xf]
    %v1216 = vld [vmem:[#allocation8 + $0x3c] sm:$0xf]
    %v1217 = vld [vmem:[%s6] sm:$0x1]
    %v1219 = vlaneseq
    %v1220 = vshrl.u32 %v1219, 7
    %v1221 = vsub.s32 0, %v1220
    %v1222 = vrot.slane %v1217, %v1221
    %v1240 = vunpack.c.l.b16 %v1201
    %v1241 = vunpack.c.l.b16 %v1202
    %v1242 = vunpack.c.l.b16 %v1203
    %v1243 = vunpack.c.l.b16 %v1204
    %v1244 = vunpack.c.l.b16 %v1205
    %v1245 = vunpack.c.l.b16 %v1206
    %v1246 = vunpack.c.l.b16 %v1207
    %v1247 = vunpack.c.l.b16 %v1208
    %v1248 = vunpack.c.l.b16 %v1209
    %v1249 = vunpack.c.l.b16 %v1210
    %v1250 = vunpack.c.l.b16 %v1211
    %v1251 = vunpack.c.l.b16 %v1212
    %v1252 = vunpack.c.l.b16 %v1213
    %v1253 = vunpack.c.l.b16 %v1214
    %v1254 = vunpack.c.l.b16 %v1215
    %v1255 = vunpack.c.l.b16 %v1216
    %v1256 = vpack.c.b16 %v1241, %v1240
    %v1257 = vpack.c.b16 %v1243, %v1242
    %v1258 = vpack.c.b16 %v1245, %v1244
    %v1259 = vpack.c.b16 %v1247, %v1246
    %v1260 = vpack.c.b16 %v1249, %v1248
    %v1261 = vpack.c.b16 %v1251, %v1250
    %v1262 = vpack.c.b16 %v1253, %v1252
    %v1263 = vpack.c.b16 %v1255, %v1254
    %1272 = vmatprep.subr.bf16.mxu0 0
    %1273 = vmatpush1.bf16.msra.mxu0 %v1256
    %1274 = vmatprep.subr.bf16.mxu0 0
    %1275 = vmatpush1.bf16.msra.mxu0 %v1257
    %1276 = vmatprep.subr.bf16.mxu0 0
    %1277 = vmatpush1.bf16.msra.mxu0 %v1258
    %1278 = vmatprep.subr.bf16.mxu0 0
    %1279 = vmatpush1.bf16.msra.mxu0 %v1259
    %1280 = vmatprep.subr.bf16.mxu0 0
    %1281 = vmatpush1.bf16.msra.mxu0 %v1260
    %1282 = vmatprep.subr.bf16.mxu0 0
    %1283 = vmatpush1.bf16.msra.mxu0 %v1261
    %1284 = vmatprep.subr.bf16.mxu0 0
    %1285 = vmatpush1.bf16.msra.mxu0 %v1262
    %1286 = vmatprep.subr.bf16.mxu0 0
    %1287 = vmatpush1.bf16.msra.mxu0 %v1263
    %1288 = vmatprep.subr.bf16.mxu0 0
    %1289 = vmatpush1.bf16.msra.mxu0 0
    %1290 = vmatprep.subr.bf16.mxu0 0
    %1291 = vmatpush1.bf16.msra.mxu0 0
    %1292 = vmatprep.subr.bf16.mxu0 0
    %1293 = vmatpush1.bf16.msra.mxu0 0
    %1294 = vmatprep.subr.bf16.mxu0 0
    %1295 = vmatpush1.bf16.msra.mxu0 0
    %1296 = vmatprep.subr.bf16.mxu0 0
    %1297 = vmatpush1.bf16.msra.mxu0 0
    %1298 = vmatprep.subr.bf16.mxu0 0
    %1299 = vmatpush1.bf16.msra.mxu0 0
    %1300 = vmatprep.subr.bf16.mxu0 0
    %1301 = vmatpush1.bf16.msra.mxu0 0
    %1302 = vmatprep.subr.bf16.mxu0 0
    %1303 = vmatpush1.bf16.msra.mxu0 0
    %1304 = vmatprep.mubr.bf16.mxu0 0
    %1305 = vmatmul.mubr.bf16.gmra.mrb[0].mxu0 %v1199
    %v1306 = vpop.f32.mrb[0].mxu0
    %v1307 = vadd.f32 %v1222, %v1306
    %v1308 = vpop.f32.mrb[0].mxu0
    %v1309 = vpop.f32.mrb[0].mxu0
    %v1310 = vadd.f32 %v1222, %v1309
    %v1311 = vpop.f32.mrb[0].mxu0
    %1312 = vmatprep.mubr.bf16.mxu0 0
    %1313 = vmatmul.mubr.bf16.gmra.mrb[0].mxu0 %v1200
    %v1314 = vpop.f32.mrb[0].mxu0
    %v1315 = vadd.f32 %v1222, %v1314
    %v1316 = vpop.f32.mrb[0].mxu0
    %v1317 = vpop.f32.mrb[0].mxu0
    %v1318 = vadd.f32 %v1222, %v1317
    %v1319 = vpop.f32.mrb[0].mxu0
    %1320 = vdwg.mxu0
    %v1321 = vmax.f32 %v1307, 0.0
    %v1322 = vmax.f32 %v1310, 0.0
    %v1323 = vmax.f32 %v1315, 0.0
    %v1324 = vmax.f32 %v1318, 0.0
    %v1325 = vld [vmem:[%s7] sm:$0x1]
    %v1327 = vlaneseq
    %v1328 = vshrl.u32 %v1327, 7
    %v1329 = vsub.s32 0, %v1328
    %v1330 = vrot.slane %v1325, %v1329
    %v1332 = vmul.f32 %v1321, %v1330
    %v1333 = vmul.f32 %v1322, %v1330
    %v1334 = vmul.f32 %v1323, %v1330
    %v1335 = vmul.f32 %v1324, %v1330
    %1336 = vadd.xlane.f32.xlu0 %v1332
    %v1337 = vpop.xlane.xlu0 %1336
    %1338 = vadd.xlane.f32.xlu0 %v1333
    %v1339 = vpop.xlane.xlu0 %1338
    %1340 = vadd.xlane.f32.xlu0 %v1334
    %v1341 = vpop.xlane.xlu0 %1340
    %1342 = vadd.xlane.f32.xlu0 %v1335
    %v1343 = vpop.xlane.xlu0 %1342
    %v1344 = vld [vmem:[#allocation2] sm:$0x1]
    %v1346 = vlaneseq
    %v1347 = vshrl.u32 %v1346, 7
    %v1348 = vsub.s32 0, %v1347
    %v1349 = vrot.slane %v1344, %v1348
    %v1351 = vadd.f32 %v1337, %v1349
    %v1352 = vadd.f32 %v1339, %v1349
    %v1353 = vadd.f32 %v1341, %v1349
    %v1354 = vadd.f32 %v1343, %v1349
    %v1355 = vmax.f32 %v1351, %v1353
    %v1356 = vmax.f32 %v1352, %v1354
    %v1357 = vsub.f32 %v1351, %v1355
    %v1358 = vsub.f32 %v1352, %v1356
    %v1359 = vmul.f32 %v1357, 1.442695
    %v1360 = vpow.pop %v1359
    %v1361 = vmul.f32 %v1358, 1.442695
    %v1362 = vpow.pop %v1361
    %v1363 = vsub.f32 %v1353, %v1355
    %v1364 = vsub.f32 %v1354, %v1356
    %v1365 = vmul.f32 %v1363, 1.442695
    %v1366 = vpow.pop %v1365
    %v1367 = vmul.f32 %v1364, 1.442695
    %v1368 = vpow.pop %v1367
    %v1369 = vadd.f32 %v1360, %v1366
    %v1370 = vadd.f32 %v1362, %v1368
    %v1371 = vrcp.pop %v1369
    %v1372 = vrcp.pop %v1370
    %v1373 = vmul.f32 %v1360, %v1371
    %v1374 = vmul.f32 %v1362, %v1372
    %v1375 = vmul.f32 %v1366, %v1371
    %v1376 = vmul.f32 %v1368, %v1372
    %v1377 = vlaneseq
    %v1378 = vand.u32 %v1377, 127
    %vm1379 = vcmp.eq.s32.totalorder %v1378, 0
    %1381 = vset.pattern.permute.xlu0 0
    %1382 = vperm.xlu0 %1381, %v1373
    %v1383 = vpop.permute.xlu0 %1382
    %1386 = vset.pattern.permute.xlu0 0
    %1387 = vperm.xlu0 %1386, %v1374
    %v1388 = vpop.permute.xlu0 %1387
    %1391 = vset.pattern.permute.xlu0 0
    %1392 = vperm.xlu0 %1391, %v1375
    %v1393 = vpop.permute.xlu0 %1392
    %1396 = vset.pattern.permute.xlu0 0
    %1397 = vperm.xlu0 %1396, %v1376
    %v1398 = vpop.permute.xlu0 %1397
    %v1400 = vsel %vm1379, %v1383, %v1393
    %v1401 = vsel %vm1379, %v1388, %v1398
    %vm1402 = vcmask 15360
    %1403 = vst.msk [vmem:[%s9] sm:$0xff] %vm1402, %v1400
    %1404 = vst.msk [vmem:[%s9 + $0x8] sm:$0xff] %vm1402, %v1401
    // Predicated region
    $region54: #{tpu_custom_call.1} parent=1 // pred_check
      _
    $region55: #{tpu_custom_call.1} parent=1 // pred_check_branch
      %1406 = sbr.rel (0) target = $region57
    $region56: #{tpu_custom_call.1} parent=1 // pred_region
      _
    $region57: #{tpu_custom_call.1} parent=1 // pred_fallthru
      _
    // Predicated region
    $region58: #{tpu_custom_call.1} parent=1 // pred_check
      _
    $region59: #{tpu_custom_call.1} parent=1 // pred_check_branch
      %1408 = sbr.rel (0) target = $region61
    $region60: #{tpu_custom_call.1} parent=1 // pred_region
      _
    $region61: #{tpu_custom_call.1} parent=1 // pred_fallthru
      _
    %1409 = vsyncpa [#allocation4], 1
    %1410 = vsyncpa [#allocation6], 1
    %1411 = vsyncpa [#allocation9], 1

</llo_original>
